<compile_context>
chip_gen: v5e
topology: v5e:2x2
jax: 0.10.0
libtpu: 0.0.40
codegen_flags: <defaults>
</compile_context>

<pallas_src>
import jax
import jax.numpy as jnp
from jax.experimental import pallas as pl
from jax.experimental.pallas import tpu as pltpu

_LANE = 128
_SUBLANE = 8
_VMEM_BUDGET = 40 * 1024 * 1024  # stay well under v7x's 64 MiB physical VMEM


def _round_up(n, m):
    return pl.cdiv(n, m) * m


def controller_kernel(x_ref, w_ref, b_ref, o_ref):
    # x_ref: (tb, In)    w_ref: (In, OutP)   (pre-transposed at init)
    # b_ref: (1, OutP)   o_ref: (tb, OutP)   (lane-dense, OutP % 128 == 0)
    acc = jnp.dot(x_ref[...], w_ref[...], preferred_element_type=jnp.float32)
    acc = acc + b_ref[...].astype(jnp.float32)   # (1, OutP) row broadcast
    o_ref[...] = jnp.tanh(acc).astype(o_ref.dtype)  # f32 tanh on the EUP


def prepare_controller_params(weight, bias, *, dtype=None):
    """One-time (init-time) parameter prep.

    weight: (output_size, input_size) PyTorch layout, bias: (output_size,).
    Pads the output features to a multiple of 128 lanes (zero padding) and
    transposes the weight to (input_size, out_p) so the kernel needs no
    per-step transpose. Optionally casts the weight to `dtype` (e.g. bf16) to
    halve HBM read traffic; bias stays f32.
    """
    out_size, in_size = weight.shape
    out_p = _round_up(out_size, _LANE)
    if out_p != out_size:
        weight = jnp.pad(weight, ((0, out_p - out_size), (0, 0)))
        bias = jnp.pad(bias, (0, out_p - out_size))
    w_t = weight.T                      # (in_size, out_p), copied once at init
    if dtype is not None:
        w_t = w_t.astype(dtype)
    b2 = bias.astype(jnp.float32).reshape(1, out_p)
    return w_t, b2, out_size


def controller_forward(x, w_t, b2, out_size, *, batch_block=512,
                       trim_output=True):
    """out = tanh(x @ W.T + b), with params from prepare_controller_params.

    x:   (B, input_size)
    w_t: (input_size, out_p)  pre-transposed, lane-padded weight
    b2:  (1, out_p)           lane-padded bias (f32)
    """
    B, in_size = x.shape
    in_w, out_p = w_t.shape
    assert in_w == in_size, (in_w, in_size)

    out_dtype = x.dtype
    if x.dtype != w_t.dtype:
        x = x.astype(w_t.dtype)         # bf16 path: halves x HBM read traffic

    itemsize = jnp.dtype(x.dtype).itemsize
    out_itemsize = jnp.dtype(out_dtype).itemsize

    # Batch tile: >= 2 blocks when B >= 16 so v7x's two TensorCores both get
    # work (no-op on single-TC v5e/v6e); sublane-aligned; up to batch_block.
    if B >= 16:
        tb = min(batch_block, _round_up(pl.cdiv(B, 2), _SUBLANE))
    else:
        tb = _round_up(max(B, 1), _SUBLANE)
    tb = max(_SUBLANE, tb)

    def _vmem_bytes(tb_):
        return (2 * tb_ * in_size * itemsize          # x tile, double-buffered
                + in_size * out_p * itemsize          # weight, single buffer
                + out_p * 4                           # bias, single buffer
                + 2 * tb_ * out_p * out_itemsize)     # out tile, double-buffered

    while _vmem_bytes(tb) > _VMEM_BUDGET and tb > _SUBLANE:
        tb = max(_SUBLANE, _round_up(tb // 2, _SUBLANE))
    # TODO(synk): if in_size * out_p alone outgrows the VMEM budget, add a K
    # ("arbitrary") grid axis with an f32 VMEM accumulator instead of keeping
    # the full weight resident.

    grid = (pl.cdiv(B, tb),)            # ragged last block; no HBM pad of x
    vmem_limit = int(min(max(_vmem_bytes(tb) + (8 << 20), 32 << 20), 56 << 20))

    out_padded = pl.pallas_call(
        controller_kernel,
        out_shape=jax.ShapeDtypeStruct((B, out_p), out_dtype),
        grid=grid,
        in_specs=[
            pl.BlockSpec((tb, in_size), lambda i: (i, 0)),        # x row tile
            pl.BlockSpec((in_size, out_p), lambda i: (0, 0),      # full weight
                         pipeline_mode=pl.Buffered(1)),           # grid-invariant
            pl.BlockSpec((1, out_p), lambda i: (0, 0),            # full bias
                         pipeline_mode=pl.Buffered(1)),
        ],
        out_specs=pl.BlockSpec((tb, out_p), lambda i: (i, 0)),
        compiler_params=pltpu.CompilerParams(
            dimension_semantics=("parallel",),
            vmem_limit_bytes=vmem_limit),
        cost_estimate=pl.CostEstimate(
            flops=2 * B * in_size * out_p,
            transcendentals=B * out_p,
            bytes_accessed=(itemsize * (B * in_size + in_size * out_p)
                            + 4 * out_p
                            + out_itemsize * B * out_p)),
    )(x, w_t, b2)

    if trim_output and out_p != out_size:
        # Lane padding removal; consumers that tolerate (B, out_p) can pass
        # trim_output=False and skip this extra HBM pass.
        return out_padded[:, :out_size]
    return out_padded


if __name__ == "__main__":
    key = jax.random.PRNGKey(0)
    kx, kw, kb = jax.random.split(key, 3)

    batch = 8
    input_size = 32
    output_size = 16

    x = jax.random.normal(kx, (batch, input_size), dtype=jnp.float32)
    # nn.Linear-style uniform init bounds, deterministic.
    bound = 1.0 / jnp.sqrt(input_size)
    weight = jax.random.uniform(
        kw, (output_size, input_size), minval=-bound, maxval=bound,
        dtype=jnp.float32)
    bias = jax.random.uniform(
        kb, (output_size,), minval=-bound, maxval=bound, dtype=jnp.float32)

    # One-time parameter prep (init time, not per forward call).
    w_t, b2, out_size = prepare_controller_params(weight, bias)

    out = controller_forward(x, w_t, b2, out_size)
    jax.block_until_ready(out)

    # Pure-JAX reference check (matches torch.tanh(linear(x))).
    ref = jnp.tanh(x @ weight.T + bias)
    assert out.shape == (batch, output_size)
    assert jnp.allclose(out, ref, atol=1e-5, rtol=1e-5)

    print("KERNEL_OK")
</pallas_src>

<mosaic_0001>
module attributes {stable_mosaic.version = 11 : i64} {
  func.func @controller_kernel(%arg0: i32, %arg1: memref<8x32xf32, #tpu.memory_space<vmem>>, %arg2: memref<32x128xf32, #tpu.memory_space<vmem>>, %arg3: memref<1x128xf32, #tpu.memory_space<vmem>>, %arg4: memref<8x128xf32, #tpu.memory_space<vmem>>) attributes {dimension_semantics = [#tpu.dimension_semantics<parallel>], iteration_bounds = array<i64: 1>, scalar_prefetch = 0 : i64, scratch_operands = 0 : i64, tpu.core_type = #tpu.core_type<tc>, window_params = [{transform_indices = @transform_0, window_bounds = array<i64: 8, 32>}, {pipeline_mode = #tpu.pipeline_mode<synchronous>, transform_indices = @transform_1, window_bounds = array<i64: 32, 128>}, {pipeline_mode = #tpu.pipeline_mode<synchronous>, transform_indices = @transform_2, window_bounds = array<i64: 1, 128>}, {transform_indices = @transform_3, window_bounds = array<i64: 8, 128>}]} {
    %c0 = arith.constant 0 : index
    %c0_0 = arith.constant 0 : index
    %0 = vector.load %arg1[%c0, %c0_0] : memref<8x32xf32, #tpu.memory_space<vmem>>, vector<8x32xf32>
    %c0_1 = arith.constant 0 : index
    %c0_2 = arith.constant 0 : index
    %1 = vector.load %arg2[%c0_1, %c0_2] : memref<32x128xf32, #tpu.memory_space<vmem>>, vector<32x128xf32>
    %cst = arith.constant dense<0.000000e+00> : vector<8x128xf32>
    %2 = tpu.matmul %0, %1, %cst {dimension_numbers = #tpu.dot_dimension_numbers<[1], [0], [0], [1], [0, 0, 1, 1], [], []>} : vector<8x32xf32>, vector<32x128xf32>, vector<8x128xf32> -> vector<8x128xf32>
    %c0_3 = arith.constant 0 : index
    %c0_4 = arith.constant 0 : index
    %3 = vector.load %arg3[%c0_3, %c0_4] : memref<1x128xf32, #tpu.memory_space<vmem>>, vector<1x128xf32>
    %4 = vector.broadcast %3 : vector<1x128xf32> to vector<8x128xf32>
    %5 = arith.addf %2, %4 : vector<8x128xf32>
    %6 = math.tanh %5 : vector<8x128xf32>
    %c0_5 = arith.constant 0 : index
    %c0_6 = arith.constant 0 : index
    %7 = vector.load %arg4[%c0_5, %c0_6] : memref<8x128xf32, #tpu.memory_space<vmem>>, vector<8x128xf32>
    tpu.vector_store %arg4[%c0_5, %c0_6], %6 {strides = array<i32>} : memref<8x128xf32, #tpu.memory_space<vmem>>, vector<8x128xf32>,
    return
  }
  func.func @transform_0(%arg0: i32) -> (i32, i32) {
    %c0_i32 = arith.constant 0 : i32
    %c0_i32_0 = arith.constant 0 : i32
    return %arg0, %c0_i32 : i32, i32
  }
  func.func @transform_1(%arg0: i32) -> (i32, i32) {
    %c0_i32 = arith.constant 0 : i32
    %c0_i32_0 = arith.constant 0 : i32
    %c0_i32_1 = arith.constant 0 : i32
    return %c0_i32, %c0_i32_0 : i32, i32
  }
  func.func @transform_2(%arg0: i32) -> (i32, i32) {
    %c0_i32 = arith.constant 0 : i32
    %c0_i32_0 = arith.constant 0 : i32
    %c0_i32_1 = arith.constant 0 : i32
    return %c0_i32, %c0_i32_0 : i32, i32
  }
  func.func @transform_3(%arg0: i32) -> (i32, i32) {
    %c0_i32 = arith.constant 0 : i32
    %c0_i32_0 = arith.constant 0 : i32
    return %arg0, %c0_i32 : i32, i32
  }
}

</mosaic_0001>

<llo_original>
// kernel: tpu_custom_call.1
$region0: #{tpu_custom_call.1}
  #allocation0 [shape = 'u32[]', space=smem, size = 0x4, offset = 0x4, fixed_abs, tag = 'smem constant byte address 0x4 - core index']
  #allocation1 [shape = 'u32[72,128]{1,0:T(1,128)}', space=vmem, size = 0x9000, scoped, tag = 'internal scratch']
  %s0 = inlined_call_operand.hbm [shape: f32[8,32], index: 0, kind: input, shape index: {}]
  %s1 = inlined_call_operand.hbm [shape: f32[32,128], index: 1, kind: input, shape index: {}]
  %s2 = inlined_call_operand.vmem [shape: f32[1,128], index: 2, kind: input, shape index: {}]
  %s3 = inlined_call_operand.hbm [shape: f32[8,128], index: 3, kind: output, shape index: {}]
  %s4 = sld [smem:[#allocation0]]
  $region30: #{tpu_custom_call.1} parent=0
    _
  %s6 = ssub.s32 1, %s4
  %s7 = scalar_select 0, %s6, %s4
  $region1: #{tpu_custom_call.1} parent=0
    #allocation2 [shape = 'u8[4096]{0}', space=vmem, size = 0x1000, scoped, tag = 'input window, operand 0, single buffered']
    #allocation3 [shape = 's32[1]{0}', space=sflag, size = 0x4, scoped, tag = 'scoped memory for tpu_custom_call.1']
    #allocation4 [shape = 's32[1]{0}', space=sflag, size = 0x4, scoped, tag = 'scoped memory for tpu_custom_call.1']
    #allocation5 [shape = 'u8[16384]{0}', space=vmem, size = 0x4000, scoped, tag = 'input window, operand 1, single buffered']
    #allocation6 [shape = 's32[1]{0}', space=sflag, size = 0x4, scoped, tag = 'scoped memory for tpu_custom_call.1']
    #allocation7 [shape = 'u8[4096]{0}', space=vmem, size = 0x1000, scoped, tag = 'output window, operand 0, single buffered']
    %8 = vsyncpa [#allocation3], 0
    %9 = vsyncpa [#allocation6], 0
    %10 = vsyncpa [#allocation4], 0
    // Predicated region
    $region2: #{tpu_custom_call.1} parent=1 // pred_check
      _
    $region3: #{tpu_custom_call.1} parent=1 // pred_check_branch
      %12 = sbr.rel (0) target = $region5
    $region4: #{tpu_custom_call.1} parent=1 // pred_region
      %14 = vsyncadd [#allocation3], 0
      %s16 = sshll.u32 %s0, 4
      %s17 = int_to_ptr.hbm [resolvable:$true] %s16
      %s18 = sshll.u32 [#allocation2], 4
      %s19 = int_to_ptr.vmem [resolvable:$true] %s18
      %21 = dma.hbm_to_vmem [thread:$0]  %s17, 128, %s19, [#allocation3]
    $region5: #{tpu_custom_call.1} parent=1 // pred_fallthru
      _
    // Predicated region
    $region6: #{tpu_custom_call.1} parent=1 // pred_check
      _
    $region7: #{tpu_custom_call.1} parent=1 // pred_check_branch
      %23 = sbr.rel (0) target = $region9
    $region8: #{tpu_custom_call.1} parent=1 // pred_region
      %25 = vsyncadd [#allocation6], 0
      %s26 = sshll.u32 %s1, 4
      %s27 = int_to_ptr.hbm [resolvable:$true] %s26
      %s28 = sshll.u32 [#allocation5], 4
      %s29 = int_to_ptr.vmem [resolvable:$true] %s28
      %34 = dma.hbm_to_vmem [thread:$0]  %s27, 512, %s29, [#allocation6], 128, 128, 8
    $region9: #{tpu_custom_call.1} parent=1 // pred_fallthru
      _
    // Predicated region
    $region10: #{tpu_custom_call.1} parent=1 // pred_check
      _
    $region11: #{tpu_custom_call.1} parent=1 // pred_check_branch
      %36 = sbr.rel (0) target = $region13
    $region12: #{tpu_custom_call.1} parent=1 // pred_region
      _
    $region13: #{tpu_custom_call.1} parent=1 // pred_fallthru
      _
    // Predicated region
    $region14: #{tpu_custom_call.1} parent=1 // pred_check
      _
    $region15: #{tpu_custom_call.1} parent=1 // pred_check_branch
      %38 = sbr.rel (0) target = $region17
    $region16: #{tpu_custom_call.1} parent=1 // pred_region
      %40 = dma.done [#allocation3], 128
    $region17: #{tpu_custom_call.1} parent=1 // pred_fallthru
      _
    // Predicated region
    $region18: #{tpu_custom_call.1} parent=1 // pred_check
      _
    $region19: #{tpu_custom_call.1} parent=1 // pred_check_branch
      %42 = sbr.rel (0) target = $region21
    $region20: #{tpu_custom_call.1} parent=1 // pred_region
      %44 = dma.done [#allocation6], 512
    $region21: #{tpu_custom_call.1} parent=1 // pred_fallthru
      _
    %v45 = vld [vmem:[#allocation2] sm:$0xff]
    %v46 = vld [vmem:[#allocation5] sm:$0xff]
    %v47 = vld [vmem:[#allocation5 + $0x8] sm:$0xff]
    %v48 = vld [vmem:[#allocation5 + $0x10] sm:$0xff]
    %v49 = vld [vmem:[#allocation5 + $0x18] sm:$0xff]
    %v50 = vld [vmem:[%s2] sm:$0x1]
    %v52 = vperm.slane %v50, 0
    %vm54 = vcmask 261120
    %v56 = vsel %vm54, %v45, 0
    %58 = vmatpush.msra.mxu0 0.0
    %59 = vmatpush.msra.mxu0 0.0
    %60 = vmatpush.msra.mxu0 0.0
    %61 = vmatpush.msra.mxu0 0.0
    %62 = vmatpush.msra.mxu0 0.0
    %63 = vmatpush.msra.mxu0 0.0
    %64 = vmatpush.msra.mxu0 0.0
    %65 = vmatpush.msra.mxu0 0.0
    %66 = vmatpush.msra.mxu0 0.0
    %67 = vmatpush.msra.mxu0 0.0
    %68 = vmatpush.msra.mxu0 0.0
    %69 = vmatpush.msra.mxu0 0.0
    %70 = vmatpush.msra.mxu0 %v49
    %71 = vmatpush.msra.mxu0 %v48
    %72 = vmatpush.msra.mxu0 %v47
    %73 = vmatpush.msra.mxu0 %v46
    %74 = vmatmul.f32.gmra.mxu0 %v56
    %v75 = vpop.f32.mrf.mxu0
    %v76 = vadd.f32 %v52, %v75
    %77 = vdwg.mxu0
    %v78 = vtanh.pop %v76
    %79 = vst [vmem:[#allocation7] sm:$0xff] %v78
    // Predicated region
    $region22: #{tpu_custom_call.1} parent=1 // pred_check
      _
    $region23: #{tpu_custom_call.1} parent=1 // pred_check_branch
      %81 = sbr.rel (0) target = $region25
    $region24: #{tpu_custom_call.1} parent=1 // pred_region
      %83 = vsyncadd [#allocation4], 0
      %s85 = sshll.u32 [#allocation7], 4
      %s86 = int_to_ptr.vmem [resolvable:$true] %s85
      %s87 = sshll.u32 %s3, 4
      %s88 = int_to_ptr.hbm [resolvable:$true] %s87
      %90 = dma.vmem_to_hbm [thread:$0]  %s86, 128, %s88, [#allocation4]
    $region25: #{tpu_custom_call.1} parent=1 // pred_fallthru
      _
    // Predicated region
    $region26: #{tpu_custom_call.1} parent=1 // pred_check
      _
    $region27: #{tpu_custom_call.1} parent=1 // pred_check_branch
      %92 = sbr.rel (0) target = $region29
    $region28: #{tpu_custom_call.1} parent=1 // pred_region
      %94 = dma.done [#allocation4], 128
    $region29: #{tpu_custom_call.1} parent=1 // pred_fallthru
      _
    %95 = vsyncpa [#allocation3], 1
    %96 = vsyncpa [#allocation6], 1
    %97 = vsyncpa [#allocation4], 1

</llo_original>
